<compile_context>
chip_gen: v7x
topology: tpu7x:2x2x1
jax: 0.10.0
libtpu: 0.0.40
codegen_flags: <defaults>
</compile_context>

<pallas_src>
import functools

import jax
import jax.numpy as jnp
from jax.experimental import pallas as pl
from jax.experimental.pallas import tpu as pltpu


def mlp_kernel(x_ref, w1_ref, b1_ref, w2_ref, b2_ref, o_ref):
    # x: (BM, IN) f32, w1: (IN, HPAD) bf16, b1: (1, HPAD) f32,
    # w2: (HPAD, OPAD) bf16, b2: (1, OPAD) f32, o: (BM, OPAD) bf16
    x = x_ref[...].astype(jnp.bfloat16)                      # VPU cast, hidden under MXU
    h = jnp.dot(x, w1_ref[...], preferred_element_type=jnp.float32)   # f32 acc
    h = jax.nn.sigmoid(h + b1_ref[...])                      # f32 VPU/EUP
    y = jnp.dot(h.astype(jnp.bfloat16), w2_ref[...],
                preferred_element_type=jnp.float32)
    o_ref[...] = (y + b2_ref[...]).astype(o_ref.dtype)       # bf16, lane-dense store


def pad_params(w1, b1, w2, b2):
    """One-time (init-time) padding + casting of the params.

    Hidden and output dims are zero-padded to multiples of 128 so both matmuls
    and the output store are lane-dense. Padded hidden units give
    sigmoid(0)=0.5 but multiply zero W2 rows; padded output cols get b2=0 and
    are sliced off -> sliced result is exact.
    """
    in_dim, hidden = w1.shape
    out_dim = w2.shape[1]
    hpad = pl.cdiv(hidden, 128) * 128
    opad = pl.cdiv(out_dim, 128) * 128

    w1_p = jnp.zeros((in_dim, hpad), jnp.bfloat16).at[:, :hidden].set(
        w1.astype(jnp.bfloat16))
    b1_p = jnp.zeros((1, hpad), jnp.float32).at[:, :hidden].set(
        b1.astype(jnp.float32).reshape(1, hidden))
    w2_p = jnp.zeros((hpad, opad), jnp.bfloat16).at[:hidden, :out_dim].set(
        w2.astype(jnp.bfloat16))
    b2_p = jnp.zeros((1, opad), jnp.float32).at[:, :out_dim].set(
        b2.astype(jnp.float32).reshape(1, out_dim))
    return w1_p, b1_p, w2_p, b2_p


@functools.partial(jax.jit, static_argnames=("out_dim", "block_m"))
def network_forward(x, w1_p, b1_p, w2_p, b2_p, *, out_dim, block_m=512):
    """x: (B, in_dim) f32; pre-padded params from pad_params().
    Returns (B, out_dim) bf16."""
    batch, in_dim = x.shape
    hpad = w1_p.shape[1]
    opad = w2_p.shape[1]

    # Row tile: big (few grid steps, amortizes ~0.35us/step), but clamped so
    # the grid keeps >=2 steps for v7x's two TensorCores; multiple of 16 for
    # bf16 sublane packing of the output tile.
    bm = min(block_m, max(16, pl.cdiv(batch, 2)))
    bm = pl.cdiv(bm, 16) * 16
    bpad = pl.cdiv(batch, bm) * bm
    if bpad != batch:  # only pad the batch when the tile doesn't divide it
        x = jnp.pad(x, ((0, bpad - batch), (0, 0)))

    grid = (bpad // bm,)
    cost = pl.CostEstimate(
        flops=2 * bpad * (in_dim * hpad + hpad * opad),
        transcendentals=bpad * hpad,                       # sigmoid exp
        bytes_accessed=(bpad * in_dim * 4 + in_dim * hpad * 2 + hpad * 4
                        + hpad * opad * 2 + opad * 4 + bpad * opad * 2),
    )

    out = pl.pallas_call(
        mlp_kernel,
        out_shape=jax.ShapeDtypeStruct((bpad, opad), jnp.bfloat16),
        grid=grid,
        in_specs=[
            pl.BlockSpec((bm, in_dim),  lambda i: (i, 0)),   # x tile per step
            pl.BlockSpec((in_dim, hpad), lambda i: (0, 0)),  # W1: VMEM-resident
            pl.BlockSpec((1, hpad),      lambda i: (0, 0)),  # b1: VMEM-resident
            pl.BlockSpec((hpad, opad),   lambda i: (0, 0)),  # W2: VMEM-resident
            pl.BlockSpec((1, opad),      lambda i: (0, 0)),  # b2: VMEM-resident
        ],
        out_specs=pl.BlockSpec((bm, opad), lambda i: (i, 0)),
        compiler_params=pltpu.CompilerParams(
            dimension_semantics=("parallel",)),
        cost_estimate=cost,
    )(x, w1_p, b1_p, w2_p, b2_p)

    return out[:batch, :out_dim]


def init_linear_params(key, fan_in, fan_out):
    # Mimics PyTorch nn.Linear default: U(-1/sqrt(fan_in), 1/sqrt(fan_in)).
    kw, kb = jax.random.split(key)
    bound = 1.0 / jnp.sqrt(float(fan_in))
    w = jax.random.uniform(kw, (fan_in, fan_out), jnp.float32, -bound, bound)
    b = jax.random.uniform(kb, (1, fan_out), jnp.float32, -bound, bound)
    return w, b


if __name__ == "__main__":
    # Shapes implied by the module: wisconsin breast-cancer features, 2 classes.
    input_dim = 30
    hidden_layers = 64
    output_dim = 2
    batch = 256

    key = jax.random.PRNGKey(0)
    kx, k1, k2 = jax.random.split(key, 3)

    # Input already min-max normalized to [0, 1] in the reference script.
    x = jax.random.uniform(kx, (batch, input_dim), jnp.float32, 0.0, 1.0)

    w1, b1 = init_linear_params(k1, input_dim, hidden_layers)
    w2, b2 = init_linear_params(k2, hidden_layers, output_dim)

    # One-time param padding/casting (outside the jitted forward path).
    w1_p, b1_p, w2_p, b2_p = pad_params(w1, b1, w2, b2)
    w1_p, b1_p, w2_p, b2_p = jax.block_until_ready((w1_p, b1_p, w2_p, b2_p))

    out = network_forward(x, w1_p, b1_p, w2_p, b2_p, out_dim=output_dim)
    out = jax.block_until_ready(out)

    # Reference check against plain JAX (f32); tolerance covers bf16 MXU
    # operands and the bf16 output store.
    ref = jax.nn.sigmoid(x @ w1 + b1) @ w2 + b2
    assert out.shape == (batch, output_dim)
    assert jnp.allclose(out.astype(jnp.float32), ref, atol=3e-2, rtol=3e-2), \
        "mismatch vs reference"

    print("KERNEL_OK")
</pallas_src>

<mosaic_0001>
module attributes {stable_mosaic.version = 11 : i64} {
  func.func @mlp_kernel(%arg0: i32, %arg1: memref<128x30xf32, #tpu.memory_space<vmem>>, %arg2: memref<30x128xbf16, #tpu.memory_space<vmem>>, %arg3: memref<1x128xf32, #tpu.memory_space<vmem>>, %arg4: memref<128x128xbf16, #tpu.memory_space<vmem>>, %arg5: memref<1x128xf32, #tpu.memory_space<vmem>>, %arg6: memref<128x128xbf16, #tpu.memory_space<vmem>>) attributes {dimension_semantics = [#tpu.dimension_semantics<parallel>], iteration_bounds = array<i64: 2>, scalar_prefetch = 0 : i64, scratch_operands = 0 : i64, tpu.core_type = #tpu.core_type<tc>, window_params = [{transform_indices = @transform_0, window_bounds = array<i64: 128, 30>}, {pipeline_mode = #tpu.pipeline_mode<synchronous>, transform_indices = @transform_1, window_bounds = array<i64: 30, 128>}, {pipeline_mode = #tpu.pipeline_mode<synchronous>, transform_indices = @transform_2, window_bounds = array<i64: 1, 128>}, {pipeline_mode = #tpu.pipeline_mode<synchronous>, transform_indices = @transform_3, window_bounds = array<i64: 128, 128>}, {pipeline_mode = #tpu.pipeline_mode<synchronous>, transform_indices = @transform_4, window_bounds = array<i64: 1, 128>}, {transform_indices = @transform_5, window_bounds = array<i64: 128, 128>}]} {
    %c0 = arith.constant 0 : index
    %c0_0 = arith.constant 0 : index
    %0 = vector.load %arg1[%c0, %c0_0] : memref<128x30xf32, #tpu.memory_space<vmem>>, vector<128x30xf32>
    %1 = arith.truncf %0 : vector<128x30xf32> to vector<128x30xbf16>
    %c0_1 = arith.constant 0 : index
    %c0_2 = arith.constant 0 : index
    %2 = vector.load %arg2[%c0_1, %c0_2] : memref<30x128xbf16, #tpu.memory_space<vmem>>, vector<30x128xbf16>
    %cst = arith.constant dense<0.000000e+00> : vector<128x128xf32>
    %3 = tpu.matmul %1, %2, %cst {dimension_numbers = #tpu.dot_dimension_numbers<[1], [0], [0], [1], [0, 0, 1, 1], [], []>} : vector<128x30xbf16>, vector<30x128xbf16>, vector<128x128xf32> -> vector<128x128xf32>
    %c0_3 = arith.constant 0 : index
    %c0_4 = arith.constant 0 : index
    %4 = vector.load %arg3[%c0_3, %c0_4] : memref<1x128xf32, #tpu.memory_space<vmem>>, vector<1x128xf32>
    %5 = vector.broadcast %4 : vector<1x128xf32> to vector<128x128xf32>
    %6 = arith.addf %3, %5 : vector<128x128xf32>
    %7 = arith.negf %6 : vector<128x128xf32>
    %8 = math.exp %7 : vector<128x128xf32>
    %cst_5 = arith.constant 1.000000e+00 : f32
    %9 = vector.broadcast %cst_5 : f32 to vector<128x128xf32>
    %10 = arith.addf %9, %8 : vector<128x128xf32>
    %11 = arith.divf %9, %10 : vector<128x128xf32>
    %12 = arith.truncf %11 : vector<128x128xf32> to vector<128x128xbf16>
    %c0_6 = arith.constant 0 : index
    %c0_7 = arith.constant 0 : index
    %13 = vector.load %arg4[%c0_6, %c0_7] : memref<128x128xbf16, #tpu.memory_space<vmem>>, vector<128x128xbf16>
    %cst_8 = arith.constant dense<0.000000e+00> : vector<128x128xf32>
    %14 = tpu.matmul %12, %13, %cst_8 {dimension_numbers = #tpu.dot_dimension_numbers<[1], [0], [0], [1], [0, 0, 1, 1], [], []>} : vector<128x128xbf16>, vector<128x128xbf16>, vector<128x128xf32> -> vector<128x128xf32>
    %c0_9 = arith.constant 0 : index
    %c0_10 = arith.constant 0 : index
    %15 = vector.load %arg5[%c0_9, %c0_10] : memref<1x128xf32, #tpu.memory_space<vmem>>, vector<1x128xf32>
    %16 = vector.broadcast %15 : vector<1x128xf32> to vector<128x128xf32>
    %17 = arith.addf %14, %16 : vector<128x128xf32>
    %18 = arith.truncf %17 : vector<128x128xf32> to vector<128x128xbf16>
    %c0_11 = arith.constant 0 : index
    %c0_12 = arith.constant 0 : index
    %19 = vector.load %arg6[%c0_11, %c0_12] : memref<128x128xbf16, #tpu.memory_space<vmem>>, vector<128x128xbf16>
    tpu.vector_store %arg6[%c0_11, %c0_12], %18 {strides = array<i32>} : memref<128x128xbf16, #tpu.memory_space<vmem>>, vector<128x128xbf16>,
    return
  }
  func.func @transform_0(%arg0: i32) -> (i32, i32) {
    %c0_i32 = arith.constant 0 : i32
    %c0_i32_0 = arith.constant 0 : i32
    return %arg0, %c0_i32 : i32, i32
  }
  func.func @transform_1(%arg0: i32) -> (i32, i32) {
    %c0_i32 = arith.constant 0 : i32
    %c0_i32_0 = arith.constant 0 : i32
    %c0_i32_1 = arith.constant 0 : i32
    return %c0_i32, %c0_i32_0 : i32, i32
  }
  func.func @transform_2(%arg0: i32) -> (i32, i32) {
    %c0_i32 = arith.constant 0 : i32
    %c0_i32_0 = arith.constant 0 : i32
    %c0_i32_1 = arith.constant 0 : i32
    return %c0_i32, %c0_i32_0 : i32, i32
  }
  func.func @transform_3(%arg0: i32) -> (i32, i32) {
    %c0_i32 = arith.constant 0 : i32
    %c0_i32_0 = arith.constant 0 : i32
    %c0_i32_1 = arith.constant 0 : i32
    return %c0_i32, %c0_i32_0 : i32, i32
  }
  func.func @transform_4(%arg0: i32) -> (i32, i32) {
    %c0_i32 = arith.constant 0 : i32
    %c0_i32_0 = arith.constant 0 : i32
    %c0_i32_1 = arith.constant 0 : i32
    return %c0_i32, %c0_i32_0 : i32, i32
  }
  func.func @transform_5(%arg0: i32) -> (i32, i32) {
    %c0_i32 = arith.constant 0 : i32
    %c0_i32_0 = arith.constant 0 : i32
    return %arg0, %c0_i32 : i32, i32
  }
}

</mosaic_0001>

<llo_original>
// kernel: network_forward.1
$region0: #{network_forward.1}
  #allocation0 [shape = 'u32[]', space=smem, size = 0x4, offset = 0x4, fixed_abs, tag = 'smem constant byte address 0x4 - core index']
  #allocation1 [shape = 'u32[144,128]{1,0:T(1,128)}', space=vmem, size = 0x12000, scoped, tag = 'internal scratch']
  %s0 = inlined_call_operand.vmem [shape: f32[256,30], index: 0, kind: input, shape index: {}]
  %s1 = inlined_call_operand.vmem [shape: bf16[30,128], index: 1, kind: input, shape index: {}]
  %s2 = inlined_call_operand.vmem [shape: f32[1,128], index: 2, kind: input, shape index: {}]
  %s3 = inlined_call_operand.vmem [shape: bf16[128,128], index: 3, kind: input, shape index: {}]
  %s4 = inlined_call_operand.vmem [shape: f32[1,128], index: 4, kind: input, shape index: {}]
  %s5 = inlined_call_operand.vmem [shape: bf16[256,128], index: 5, kind: output, shape index: {}]
  %s6 = sld [smem:[#allocation0]]
  $region53: #{network_forward.1} parent=0
    _
  %s8 = ssub.s32 1, %s6
  %s9 = scalar_select 0, %s8, %s6
  loop: start=0, step=1, limit=4
  $region2: #{network_forward.1} parent=0 // loop_pre_header
    _
  $region3: #{network_forward.1} parent=0 // loop_header
    %s11 = sphi 0, %s15
    %p12 = scmp.ge.s32.totalorder %s11, 4
    %s21 = sphi 0, %s23
    %s24 = sphi 0, %s21
    %s25 = sphi 0, %s24
    %s41 = sphi 0, %s25
    %s45 = sphi 0, %s45
    %s47 = sphi 0, %s45
    %s48 = sphi 0, %s47
    %s62 = sphi 0, %s48
    %s66 = sphi 0, %s66
    %s68 = sphi 0, %s66
    %s69 = sphi 0, %s68
    %s83 = sphi 0, %s69
    %s87 = sphi 0, %s87
    %s89 = sphi 0, %s87
    %s90 = sphi 0, %s89
    %s104 = sphi 0, %s90
    %s108 = sphi 0, %s108
    %s110 = sphi 0, %s108
    %s111 = sphi 0, %s110
    %s125 = sphi 0, %s111
    %s131 = sphi 0, %s133
    %s134 = sphi 0, %s131
    %s135 = sphi 0, %s134
    %s151 = sphi 0, %s135
  $region4: #{network_forward.1} parent=0 // loop_header_branch
    %14 = sbr.rel (%p12) target = $region8
  $region5: #{network_forward.1} parent=0 // loop_body
    %s16 = ssub.s32 %s11, 1
    %s17 = ssub.s32 %s11, 2
    %s18 = sadd.s32 %s11, 1
    %s19 = ssub.s32 %s11, %s18
    %p20 = scmp.eq.s32.totalorder %s19, 0
    %s22 = sadd.s32 %s21, 1
    %s23 = scalar_select %p20, %s21, %s22
    %p26 = pneg %p20
    %p27 = scmp.eq.s32.totalorder %s11, 1
    %p28 = por %p26, %p27
    %p29 = scmp.ne.s32.totalorder %s21, %s24
    %p30 = scmp.eq.s32.totalorder %s11, 0
    %p31 = por %p29, %p30
    %p32 = scmp.ne.s32.totalorder %s21, %s24
    %p33 = scmp.eq.s32.totalorder %s16, 1
    %p34 = por %p32, %p33
    %p35 = scmp.ne.s32.totalorder %s24, %s25
    %p36 = scmp.eq.s32.totalorder %s16, 0
    %p37 = por %p35, %p36
    %p38 = scmp.ne.s32.totalorder %s24, %s25
    %p39 = scmp.eq.s32.totalorder %s17, 1
    %p40 = por %p38, %p39
    %p42 = scmp.ne.s32.totalorder %s25, %s41
    %p43 = scmp.eq.s32.totalorder %s17, 0
    %p44 = por %p42, %p43
    %s46 = sadd.s32 %s45, 1
    %p49 = scmp.eq.s32.totalorder %s11, 1
    %p50 = scmp.ne.s32.totalorder %s45, %s47
    %p51 = scmp.eq.s32.totalorder %s11, 0
    %p52 = por %p50, %p51
    %p53 = scmp.ne.s32.totalorder %s45, %s47
    %p54 = scmp.eq.s32.totalorder %s16, 1
    %p55 = por %p53, %p54
    %p56 = scmp.ne.s32.totalorder %s47, %s48
    %p57 = scmp.eq.s32.totalorder %s16, 0
    %p58 = por %p56, %p57
    %p59 = scmp.ne.s32.totalorder %s47, %s48
    %p60 = scmp.eq.s32.totalorder %s17, 1
    %p61 = por %p59, %p60
    %p63 = scmp.ne.s32.totalorder %s48, %s62
    %p64 = scmp.eq.s32.totalorder %s17, 0
    %p65 = por %p63, %p64
    %s67 = sadd.s32 %s66, 1
    %p70 = scmp.eq.s32.totalorder %s11, 1
    %p71 = scmp.ne.s32.totalorder %s66, %s68
    %p72 = scmp.eq.s32.totalorder %s11, 0
    %p73 = por %p71, %p72
    %p74 = scmp.ne.s32.totalorder %s66, %s68
    %p75 = scmp.eq.s32.totalorder %s16, 1
    %p76 = por %p74, %p75
    %p77 = scmp.ne.s32.totalorder %s68, %s69
    %p78 = scmp.eq.s32.totalorder %s16, 0
    %p79 = por %p77, %p78
    %p80 = scmp.ne.s32.totalorder %s68, %s69
    %p81 = scmp.eq.s32.totalorder %s17, 1
    %p82 = por %p80, %p81
    %p84 = scmp.ne.s32.totalorder %s69, %s83
    %p85 = scmp.eq.s32.totalorder %s17, 0
    %p86 = por %p84, %p85
    %s88 = sadd.s32 %s87, 1
    %p91 = scmp.eq.s32.totalorder %s11, 1
    %p92 = scmp.ne.s32.totalorder %s87, %s89
    %p93 = scmp.eq.s32.totalorder %s11, 0
    %p94 = por %p92, %p93
    %p95 = scmp.ne.s32.totalorder %s87, %s89
    %p96 = scmp.eq.s32.totalorder %s16, 1
    %p97 = por %p95, %p96
    %p98 = scmp.ne.s32.totalorder %s89, %s90
    %p99 = scmp.eq.s32.totalorder %s16, 0
    %p100 = por %p98, %p99
    %p101 = scmp.ne.s32.totalorder %s89, %s90
    %p102 = scmp.eq.s32.totalorder %s17, 1
    %p103 = por %p101, %p102
    %p105 = scmp.ne.s32.totalorder %s90, %s104
    %p106 = scmp.eq.s32.totalorder %s17, 0
    %p107 = por %p105, %p106
    %s109 = sadd.s32 %s108, 1
    %p112 = scmp.eq.s32.totalorder %s11, 1
    %p113 = scmp.ne.s32.totalorder %s108, %s110
    %p114 = scmp.eq.s32.totalorder %s11, 0
    %p115 = por %p113, %p114
    %p116 = scmp.ne.s32.totalorder %s108, %s110
    %p117 = scmp.eq.s32.totalorder %s16, 1
    %p118 = por %p116, %p117
    %p119 = scmp.ne.s32.totalorder %s110, %s111
    %p120 = scmp.eq.s32.totalorder %s16, 0
    %p121 = por %p119, %p120
    %p122 = scmp.ne.s32.totalorder %s110, %s111
    %p123 = scmp.eq.s32.totalorder %s17, 1
    %p124 = por %p122, %p123
    %p126 = scmp.ne.s32.totalorder %s111, %s125
    %p127 = scmp.eq.s32.totalorder %s17, 0
    %p128 = por %p126, %p127
    %s129 = ssub.s32 %s11, %s18
    %p130 = scmp.eq.s32.totalorder %s129, 0
    %s132 = sadd.s32 %s131, 1
    %s133 = scalar_select %p130, %s131, %s132
    %p136 = pneg %p130
    %p137 = scmp.eq.s32.totalorder %s11, 1
    %p138 = por %p136, %p137
    %p139 = scmp.ne.s32.totalorder %s131, %s134
    %p140 = scmp.eq.s32.totalorder %s11, 0
    %p141 = por %p139, %p140
    %p142 = scmp.ne.s32.totalorder %s131, %s134
    %p143 = scmp.eq.s32.totalorder %s16, 1
    %p144 = por %p142, %p143
    %p145 = scmp.ne.s32.totalorder %s134, %s135
    %p146 = scmp.eq.s32.totalorder %s16, 0
    %p147 = por %p145, %p146
    %p148 = scmp.ne.s32.totalorder %s134, %s135
    %p149 = scmp.eq.s32.totalorder %s17, 1
    %p150 = por %p148, %p149
    %p152 = scmp.ne.s32.totalorder %s135, %s151
    %p153 = scmp.eq.s32.totalorder %s17, 0
    %p154 = por %p152, %p153
    %p155 = scmp.le.s32.totalorder 1, %s11
    %p156 = scmp.lt.s32.totalorder %s11, 3
    %p157 = pnand %p155, %p156
    %p158 = pneg %p157
    // Predicated region
    $region9: #{network_forward.1} parent=5 // pred_check
      _
    $region10: #{network_forward.1} parent=5 // pred_check_branch
      %160 = sbr.rel (%p157) target = $region12
    $region11: #{network_forward.1} parent=5 // pred_region
      %s161 = ssub.s32 %s11, 1
      // Predicated region
      $region13: #{network_forward.1} parent=11 // pred_check
        %p162 = pneg %p58
      $region14: #{network_forward.1} parent=11 // pred_check_branch
        %164 = sbr.rel (%p162) target = $region16
      $region15: #{network_forward.1} parent=11 // pred_region
        _
      $region16: #{network_forward.1} parent=11 // pred_fallthru
        _
      // Predicated region
      $region17: #{network_forward.1} parent=11 // pred_check
        %p165 = pneg %p79
      $region18: #{network_forward.1} parent=11 // pred_check_branch
        %167 = sbr.rel (%p165) target = $region20
      $region19: #{network_forward.1} parent=11 // pred_region
        _
      $region20: #{network_forward.1} parent=11 // pred_fallthru
        _
      // Predicated region
      $region21: #{network_forward.1} parent=11 // pred_check
        %p168 = pneg %p100
      $region22: #{network_forward.1} parent=11 // pred_check_branch
        %170 = sbr.rel (%p168) target = $region24
      $region23: #{network_forward.1} parent=11 // pred_region
        _
      $region24: #{network_forward.1} parent=11 // pred_fallthru
        _
      // Predicated region
      $region25: #{network_forward.1} parent=11 // pred_check
        %p171 = pneg %p121
      $region26: #{network_forward.1} parent=11 // pred_check_branch
        %173 = sbr.rel (%p171) target = $region28
      $region27: #{network_forward.1} parent=11 // pred_region
        _
      $region28: #{network_forward.1} parent=11 // pred_fallthru
        _
    $region12: #{network_forward.1} parent=5 // pred_fallthru
      _
    %p174 = scmp.lt.s32.totalorder %s11, 2
    // Predicated region
    $region29: #{network_forward.1} parent=5 // pred_check
      %p175 = pneg %p174
    $region30: #{network_forward.1} parent=5 // pred_check_branch
      %177 = sbr.rel (%p175) target = $region32
    $region31: #{network_forward.1} parent=5 // pred_region
      // Predicated region
      $region33: #{network_forward.1} parent=31 // pred_check
        %p178 = pneg %p31
      $region34: #{network_forward.1} parent=31 // pred_check_branch
        %180 = sbr.rel (%p178) target = $region36
      $region35: #{network_forward.1} parent=31 // pred_region
        %s181 = smul.u32 16, %s11
        %p182 = scmp.lt.s32.totalorder %s181, 31
        %s183 = scalar_select %p182, %s181, 31
        %s184 = smul.addr %s183, 8
        %s185 = scalar_lea.vmem %s0, %s184
        %s186 = smul.u32 16, %s11
      $region36: #{network_forward.1} parent=31 // pred_fallthru
        _
    $region32: #{network_forward.1} parent=5 // pred_fallthru
      _
    %p187 = scmp.le.s32.totalorder 1, %s11
    %p188 = scmp.lt.s32.totalorder %s11, 3
    %p189 = pnand %p187, %p188
    %p190 = pneg %p189
    // Predicated region
    $region37: #{network_forward.1} parent=5 // pred_check
      _
    $region38: #{network_forward.1} parent=5 // pred_check_branch
      %192 = sbr.rel (%p189) target = $region40
    $region39: #{network_forward.1} parent=5 // pred_region
      %s193 = ssub.s32 %s11, 1
      %s194 = smul.u32 16, %s16
      %p195 = scmp.lt.s32.totalorder %s194, 31
      %s196 = scalar_select %p195, %s194, 31
      %s197 = smul.addr %s196, 8
      %s198 = scalar_lea.vmem %s0, %s197
      %p199 = pneg %p37
      %p200 = pneg %p34
      %p201 = pneg %p58
      %p202 = pneg %p55
      %p203 = pneg %p79
      %p204 = pneg %p76
      %p205 = pneg %p100
      %p206 = pneg %p97
      %p207 = pneg %p121
      %p208 = pneg %p118
      %p209 = pneg %p147
      %p210 = pneg %p144
      %s211 = smul.u32 16, %s16
      %p212 = scmp.lt.s32.totalorder %s211, 31
      %s213 = scalar_select %p212, %s211, 31
      %s214 = smul.addr %s213, 4
      %s215 = scalar_lea.vmem %s5, %s214
      %s216 = smul.u32 16, %s16
      %p217 = scmp.lt.s32.totalorder %s216, 31
      %s218 = scalar_select %p217, %s216, 31
      %s219 = smul.addr %s218, 8
      %s220 = scalar_lea.vmem %s0, %s219
      %s221 = smul.u32 16, %s16
      %s222 = smul.u32 16, %s16
      %p223 = scmp.lt.s32.totalorder %s222, 31
      %s224 = scalar_select %p223, %s222, 31
      %s225 = smul.addr %s224, 4
      %s226 = scalar_lea.vmem %s5, %s225
      %s227 = smul.u32 16, %s16
      %v229 = vld [vmem:[%s220] sm:$0xff]
      %v230 = vld [vmem:[%s220 + $0x8] sm:$0xff]
      %v231 = vld [vmem:[%s220 + $0x10] sm:$0xff]
      %v232 = vld [vmem:[%s220 + $0x18] sm:$0xff]
      %v233 = vld [vmem:[%s220 + $0x20] sm:$0xff]
      %v234 = vld [vmem:[%s220 + $0x28] sm:$0xff]
      %v235 = vld [vmem:[%s220 + $0x30] sm:$0xff]
      %v236 = vld [vmem:[%s220 + $0x38] sm:$0xff]
      %v237 = vld [vmem:[%s220 + $0x40] sm:$0xff]
      %v238 = vld [vmem:[%s220 + $0x48] sm:$0xff]
      %v239 = vld [vmem:[%s220 + $0x50] sm:$0xff]
      %v240 = vld [vmem:[%s220 + $0x58] sm:$0xff]
      %v241 = vld [vmem:[%s220 + $0x60] sm:$0xff]
      %v242 = vld [vmem:[%s220 + $0x68] sm:$0xff]
      %v243 = vld [vmem:[%s220 + $0x70] sm:$0xff]
      %v244 = vld [vmem:[%s220 + $0x78] sm:$0xff]
      %v245 = vpack.c.bf16 %v230, %v229
      %v246 = vpack.c.bf16 %v232, %v231
      %v247 = vpack.c.bf16 %v234, %v233
      %v248 = vpack.c.bf16 %v236, %v235
      %v249 = vpack.c.bf16 %v238, %v237
      %v250 = vpack.c.bf16 %v240, %v239
      %v251 = vpack.c.bf16 %v242, %v241
      %v252 = vpack.c.bf16 %v244, %v243
      %v253 = vld [vmem:[%s1] sm:$0xf]
      %v254 = vld [vmem:[%s1 + $0x4] sm:$0xf]
      %v255 = vld [vmem:[%s1 + $0x8] sm:$0xf]
      %v256 = vld [vmem:[%s1 + $0xc] sm:$0x7]
      %v257 = vld [vmem:[%s2] sm:$0x1]
      %v259 = vlaneseq
      %v260 = vshrl.u32 %v259, 7
      %v261 = vsub.s32 0, %v260
      %v262 = vrot.slane %v257, %v261
      %v268 = vunpack.c.l.b16 %v253
      %v269 = vunpack.c.l.b16 %v254
      %v270 = vunpack.c.l.b16 %v255
      %v271 = vunpack.c.l.b16 %v256
      %v272 = vpack.c.b16 %v269, %v268
      %v273 = vpack.c.b16 %v271, %v270
      %vm275 = vcmask 244736
      %v277 = vsel %vm275, %v245, 0
      %v280 = vsel %vm275, %v246, 0
      %v283 = vsel %vm275, %v247, 0
      %v286 = vsel %vm275, %v248, 0
      %v289 = vsel %vm275, %v249, 0
      %v292 = vsel %vm275, %v250, 0
      %v295 = vsel %vm275, %v251, 0
      %v298 = vsel %vm275, %v252, 0
      %vm300 = vcmask 1046528
      %v302 = vsel %vm300, %v273, 0
      %304 = vmatprep.subr.bf16.mxu0 0
      %305 = vmatpush1.bf16.msra.mxu0 %v272
      %306 = vmatprep.subr.bf16.mxu0 0
      %307 = vmatpush1.bf16.msra.mxu0 %v302
      %308 = vmatprep.subr.bf16.mxu0 0
      %309 = vmatpush1.bf16.msra.mxu0 0
      %310 = vmatprep.subr.bf16.mxu0 0
      %311 = vmatpush1.bf16.msra.mxu0 0
      %312 = vmatprep.subr.bf16.mxu0 0
      %313 = vmatpush1.bf16.msra.mxu0 0
      %314 = vmatprep.subr.bf16.mxu0 0
      %315 = vmatpush1.bf16.msra.mxu0 0
      %316 = vmatprep.subr.bf16.mxu0 0
      %317 = vmatpush1.bf16.msra.mxu0 0
      %318 = vmatprep.subr.bf16.mxu0 0
      %319 = vmatpush1.bf16.msra.mxu0 0
      %320 = vmatprep.subr.bf16.mxu0 0
      %321 = vmatpush1.bf16.msra.mxu0 0
      %322 = vmatprep.subr.bf16.mxu0 0
      %323 = vmatpush1.bf16.msra.mxu0 0
      %324 = vmatprep.subr.bf16.mxu0 0
      %325 = vmatpush1.bf16.msra.mxu0 0
      %326 = vmatprep.subr.bf16.mxu0 0
      %327 = vmatpush1.bf16.msra.mxu0 0
      %328 = vmatprep.subr.bf16.mxu0 0
      %329 = vmatpush1.bf16.msra.mxu0 0
      %330 = vmatprep.subr.bf16.mxu0 0
      %331 = vmatpush1.bf16.msra.mxu0 0
      %332 = vmatprep.subr.bf16.mxu0 0
      %333 = vmatpush1.bf16.msra.mxu0 0
      %334 = vmatprep.subr.bf16.mxu0 0
      %335 = vmatpush1.bf16.msra.mxu0 0
      %336 = vmatprep.mubr.bf16.mxu0 0
      %337 = vmatmul.mubr.bf16.gmra.mrb[0].mxu0 %v277
      %v338 = vpop.f32.mrb[0].mxu0
      %v339 = vadd.f32 %v262, %v338
      %v340 = vpop.f32.mrb[0].mxu0
      %v341 = vpop.f32.mrb[0].mxu0
      %v342 = vadd.f32 %v262, %v341
      %v343 = vpop.f32.mrb[0].mxu0
      %344 = vmatprep.mubr.bf16.mxu0 0
      %345 = vmatmul.mubr.bf16.gmra.mrb[0].mxu0 %v280
      %v346 = vpop.f32.mrb[0].mxu0
      %v347 = vadd.f32 %v262, %v346
      %v348 = vpop.f32.mrb[0].mxu0
      %v349 = vpop.f32.mrb[0].mxu0
      %v350 = vadd.f32 %v262, %v349
      %v351 = vpop.f32.mrb[0].mxu0
      %352 = vmatprep.mubr.bf16.mxu0 0
      %353 = vmatmul.mubr.bf16.gmra.mrb[0].mxu0 %v283
      %v354 = vpop.f32.mrb[0].mxu0
      %v355 = vadd.f32 %v262, %v354
      %v356 = vpop.f32.mrb[0].mxu0
      %v357 = vpop.f32.mrb[0].mxu0
      %v358 = vadd.f32 %v262, %v357
      %v359 = vpop.f32.mrb[0].mxu0
      %360 = vmatprep.mubr.bf16.mxu0 0
      %361 = vmatmul.mubr.bf16.gmra.mrb[0].mxu0 %v286
      %v362 = vpop.f32.mrb[0].mxu0
      %v363 = vadd.f32 %v262, %v362
      %v364 = vpop.f32.mrb[0].mxu0
      %v365 = vpop.f32.mrb[0].mxu0
      %v366 = vadd.f32 %v262, %v365
      %v367 = vpop.f32.mrb[0].mxu0
      %368 = vmatprep.mubr.bf16.mxu0 0
      %369 = vmatmul.mubr.bf16.gmra.mrb[0].mxu0 %v289
      %v370 = vpop.f32.mrb[0].mxu0
      %v371 = vadd.f32 %v262, %v370
      %v372 = vpop.f32.mrb[0].mxu0
      %v373 = vpop.f32.mrb[0].mxu0
      %v374 = vadd.f32 %v262, %v373
      %v375 = vpop.f32.mrb[0].mxu0
      %376 = vmatprep.mubr.bf16.mxu0 0
      %377 = vmatmul.mubr.bf16.gmra.mrb[0].mxu0 %v292
      %v378 = vpop.f32.mrb[0].mxu0
      %v379 = vadd.f32 %v262, %v378
      %v380 = vpop.f32.mrb[0].mxu0
      %v381 = vpop.f32.mrb[0].mxu0
      %v382 = vadd.f32 %v262, %v381
      %v383 = vpop.f32.mrb[0].mxu0
      %384 = vmatprep.mubr.bf16.mxu0 0
      %385 = vmatmul.mubr.bf16.gmra.mrb[0].mxu0 %v295
      %v386 = vpop.f32.mrb[0].mxu0
      %v387 = vadd.f32 %v262, %v386
      %v388 = vpop.f32.mrb[0].mxu0
      %v389 = vpop.f32.mrb[0].mxu0
      %v390 = vadd.f32 %v262, %v389
      %v391 = vpop.f32.mrb[0].mxu0
      %392 = vmatprep.mubr.bf16.mxu0 0
      %393 = vmatmul.mubr.bf16.gmra.mrb[0].mxu0 %v298
      %v394 = vpop.f32.mrb[0].mxu0
      %v395 = vadd.f32 %v262, %v394
      %v396 = vpop.f32.mrb[0].mxu0
      %v397 = vpop.f32.mrb[0].mxu0
      %v398 = vadd.f32 %v262, %v397
      %v399 = vpop.f32.mrb[0].mxu0
      %400 = vdwg.mxu0
      %v401 = vxor.u32 %v339, 2147483648
      %v402 = vxor.u32 %v342, 2147483648
      %v403 = vxor.u32 %v347, 2147483648
      %v404 = vxor.u32 %v350, 2147483648
      %v405 = vxor.u32 %v355, 2147483648
      %v406 = vxor.u32 %v358, 2147483648
      %v407 = vxor.u32 %v363, 2147483648
      %v408 = vxor.u32 %v366, 2147483648
      %v409 = vxor.u32 %v371, 2147483648
      %v410 = vxor.u32 %v374, 2147483648
      %v411 = vxor.u32 %v379, 2147483648
      %v412 = vxor.u32 %v382, 2147483648
      %v413 = vxor.u32 %v387, 2147483648
      %v414 = vxor.u32 %v390, 2147483648
      %v415 = vxor.u32 %v395, 2147483648
      %v416 = vxor.u32 %v398, 2147483648
      %v417 = vmul.f32 %v401, 1.442695
      %v418 = vpow.pop %v417
      %v419 = vmul.f32 %v402, 1.442695
      %v420 = vpow.pop %v419
      %v421 = vmul.f32 %v403, 1.442695
      %v422 = vpow.pop %v421
      %v423 = vmul.f32 %v404, 1.442695
      %v424 = vpow.pop %v423
      %v425 = vmul.f32 %v405, 1.442695
      %v426 = vpow.pop %v425
      %v427 = vmul.f32 %v406, 1.442695
      %v428 = vpow.pop %v427
      %v429 = vmul.f32 %v407, 1.442695
      %v430 = vpow.pop %v429
      %v431 = vmul.f32 %v408, 1.442695
      %v432 = vpow.pop %v431
      %v433 = vmul.f32 %v409, 1.442695
      %v434 = vpow.pop %v433
      %v435 = vmul.f32 %v410, 1.442695
      %v436 = vpow.pop %v435
      %v437 = vmul.f32 %v411, 1.442695
      %v438 = vpow.pop %v437
      %v439 = vmul.f32 %v412, 1.442695
      %v440 = vpow.pop %v439
      %v441 = vmul.f32 %v413, 1.442695
      %v442 = vpow.pop %v441
      %v443 = vmul.f32 %v414, 1.442695
      %v444 = vpow.pop %v443
      %v445 = vmul.f32 %v415, 1.442695
      %v446 = vpow.pop %v445
      %v447 = vmul.f32 %v416, 1.442695
      %v448 = vpow.pop %v447
      %v449 = vadd.f32 %v418, 1.0
      %v450 = vadd.f32 %v420, 1.0
      %v451 = vadd.f32 %v422, 1.0
      %v452 = vadd.f32 %v424, 1.0
      %v453 = vadd.f32 %v426, 1.0
      %v454 = vadd.f32 %v428, 1.0
      %v455 = vadd.f32 %v430, 1.0
      %v456 = vadd.f32 %v432, 1.0
      %v457 = vadd.f32 %v434, 1.0
      %v458 = vadd.f32 %v436, 1.0
      %v459 = vadd.f32 %v438, 1.0
      %v460 = vadd.f32 %v440, 1.0
      %v461 = vadd.f32 %v442, 1.0
      %v462 = vadd.f32 %v444, 1.0
      %v463 = vadd.f32 %v446, 1.0
      %v464 = vadd.f32 %v448, 1.0
      %v465 = vrcp.pop %v449
      %v466 = vmul.f32 1.0, %v465
      %v467 = vrcp.pop %v450
      %v468 = vmul.f32 1.0, %v467
      %v469 = vrcp.pop %v451
      %v470 = vmul.f32 1.0, %v469
      %v471 = vrcp.pop %v452
      %v472 = vmul.f32 1.0, %v471
      %v473 = vrcp.pop %v453
      %v474 = vmul.f32 1.0, %v473
      %v475 = vrcp.pop %v454
      %v476 = vmul.f32 1.0, %v475
      %v477 = vrcp.pop %v455
      %v478 = vmul.f32 1.0, %v477
      %v479 = vrcp.pop %v456
      %v480 = vmul.f32 1.0, %v479
      %v481 = vrcp.pop %v457
      %v482 = vmul.f32 1.0, %v481
      %v483 = vrcp.pop %v458
      %v484 = vmul.f32 1.0, %v483
      %v485 = vrcp.pop %v459
      %v486 = vmul.f32 1.0, %v485
      %v487 = vrcp.pop %v460
      %v488 = vmul.f32 1.0, %v487
      %v489 = vrcp.pop %v461
      %v490 = vmul.f32 1.0, %v489
      %v491 = vrcp.pop %v462
      %v492 = vmul.f32 1.0, %v491
      %v493 = vrcp.pop %v463
      %v494 = vmul.f32 1.0, %v493
      %v495 = vrcp.pop %v464
      %v496 = vmul.f32 1.0, %v495
      %v497 = vpack.c.bf16 %v468, %v466
      %v498 = vpack.c.bf16 %v472, %v470
      %v499 = vpack.c.bf16 %v476, %v474
      %v500 = vpack.c.bf16 %v480, %v478
      %v501 = vpack.c.bf16 %v484, %v482
      %v502 = vpack.c.bf16 %v488, %v486
      %v503 = vpack.c.bf16 %v492, %v490
      %v504 = vpack.c.bf16 %v496, %v494
      %v505 = vld [vmem:[%s3] sm:$0xf]
      %v506 = vld [vmem:[%s3 + $0x4] sm:$0xf]
      %v507 = vld [vmem:[%s3 + $0x8] sm:$0xf]
      %v508 = vld [vmem:[%s3 + $0xc] sm:$0xf]
      %v509 = vld [vmem:[%s3 + $0x10] sm:$0xf]
      %v510 = vld [vmem:[%s3 + $0x14] sm:$0xf]
      %v511 = vld [vmem:[%s3 + $0x18] sm:$0xf]
      %v512 = vld [vmem:[%s3 + $0x1c] sm:$0xf]
      %v513 = vld [vmem:[%s3 + $0x20] sm:$0xf]
      %v514 = vld [vmem:[%s3 + $0x24] sm:$0xf]
      %v515 = vld [vmem:[%s3 + $0x28] sm:$0xf]
      %v516 = vld [vmem:[%s3 + $0x2c] sm:$0xf]
      %v517 = vld [vmem:[%s3 + $0x30] sm:$0xf]
      %v518 = vld [vmem:[%s3 + $0x34] sm:$0xf]
      %v519 = vld [vmem:[%s3 + $0x38] sm:$0xf]
      %v520 = vld [vmem:[%s3 + $0x3c] sm:$0xf]
      %v521 = vld [vmem:[%s4] sm:$0x1]
      %v523 = vlaneseq
      %v524 = vshrl.u32 %v523, 7
      %v525 = vsub.s32 0, %v524
      %v526 = vrot.slane %v521, %v525
      %v544 = vunpack.c.l.b16 %v505
      %v545 = vunpack.c.l.b16 %v506
      %v546 = vunpack.c.l.b16 %v507
      %v547 = vunpack.c.l.b16 %v508
      %v548 = vunpack.c.l.b16 %v509
      %v549 = vunpack.c.l.b16 %v510
      %v550 = vunpack.c.l.b16 %v511
      %v551 = vunpack.c.l.b16 %v512
      %v552 = vunpack.c.l.b16 %v513
      %v553 = vunpack.c.l.b16 %v514
      %v554 = vunpack.c.l.b16 %v515
      %v555 = vunpack.c.l.b16 %v516
      %v556 = vunpack.c.l.b16 %v517
      %v557 = vunpack.c.l.b16 %v518
      %v558 = vunpack.c.l.b16 %v519
      %v559 = vunpack.c.l.b16 %v520
      %v560 = vpack.c.b16 %v545, %v544
      %v561 = vpack.c.b16 %v547, %v546
      %v562 = vpack.c.b16 %v549, %v548
      %v563 = vpack.c.b16 %v551, %v550
      %v564 = vpack.c.b16 %v553, %v552
      %v565 = vpack.c.b16 %v555, %v554
      %v566 = vpack.c.b16 %v557, %v556
      %v567 = vpack.c.b16 %v559, %v558
      %576 = vmatprep.subr.bf16.mxu0 0
      %577 = vmatpush1.bf16.msra.mxu0 %v560
      %578 = vmatprep.subr.bf16.mxu0 0
      %579 = vmatpush1.bf16.msra.mxu0 %v561
      %580 = vmatprep.subr.bf16.mxu0 0
      %581 = vmatpush1.bf16.msra.mxu0 %v562
      %582 = vmatprep.subr.bf16.mxu0 0
      %583 = vmatpush1.bf16.msra.mxu0 %v563
      %584 = vmatprep.subr.bf16.mxu0 0
      %585 = vmatpush1.bf16.msra.mxu0 %v564
      %586 = vmatprep.subr.bf16.mxu0 0
      %587 = vmatpush1.bf16.msra.mxu0 %v565
      %588 = vmatprep.subr.bf16.mxu0 0
      %589 = vmatpush1.bf16.msra.mxu0 %v566
      %590 = vmatprep.subr.bf16.mxu0 0
      %591 = vmatpush1.bf16.msra.mxu0 %v567
      %592 = vmatprep.subr.bf16.mxu0 0
      %593 = vmatpush1.bf16.msra.mxu0 0
      %594 = vmatprep.subr.bf16.mxu0 0
      %595 = vmatpush1.bf16.msra.mxu0 0
      %596 = vmatprep.subr.bf16.mxu0 0
      %597 = vmatpush1.bf16.msra.mxu0 0
      %598 = vmatprep.subr.bf16.mxu0 0
      %599 = vmatpush1.bf16.msra.mxu0 0
      %600 = vmatprep.subr.bf16.mxu0 0
      %601 = vmatpush1.bf16.msra.mxu0 0
      %602 = vmatprep.subr.bf16.mxu0 0
      %603 = vmatpush1.bf16.msra.mxu0 0
      %604 = vmatprep.subr.bf16.mxu0 0
      %605 = vmatpush1.bf16.msra.mxu0 0
      %606 = vmatprep.subr.bf16.mxu0 0
      %607 = vmatpush1.bf16.msra.mxu0 0
      %608 = vmatprep.mubr.bf16.mxu0 0
      %609 = vmatmul.mubr.bf16.gmra.mrb[0].mxu0 %v497
      %v610 = vpop.f32.mrb[0].mxu0
      %v611 = vadd.f32 %v526, %v610
      %v612 = vpop.f32.mrb[0].mxu0
      %v613 = vpop.f32.mrb[0].mxu0
      %v614 = vadd.f32 %v526, %v613
      %v615 = vpop.f32.mrb[0].mxu0
      %616 = vmatprep.mubr.bf16.mxu0 0
      %617 = vmatmul.mubr.bf16.gmra.mrb[0].mxu0 %v498
      %v618 = vpop.f32.mrb[0].mxu0
      %v619 = vadd.f32 %v526, %v618
      %v620 = vpop.f32.mrb[0].mxu0
      %v621 = vpop.f32.mrb[0].mxu0
      %v622 = vadd.f32 %v526, %v621
      %v623 = vpop.f32.mrb[0].mxu0
      %624 = vmatprep.mubr.bf16.mxu0 0
      %625 = vmatmul.mubr.bf16.gmra.mrb[0].mxu0 %v499
      %v626 = vpop.f32.mrb[0].mxu0
      %v627 = vadd.f32 %v526, %v626
      %v628 = vpop.f32.mrb[0].mxu0
      %v629 = vpop.f32.mrb[0].mxu0
      %v630 = vadd.f32 %v526, %v629
      %v631 = vpop.f32.mrb[0].mxu0
      %632 = vmatprep.mubr.bf16.mxu0 0
      %633 = vmatmul.mubr.bf16.gmra.mrb[0].mxu0 %v500
      %v634 = vpop.f32.mrb[0].mxu0
      %v635 = vadd.f32 %v526, %v634
      %v636 = vpop.f32.mrb[0].mxu0
      %v637 = vpop.f32.mrb[0].mxu0
      %v638 = vadd.f32 %v526, %v637
      %v639 = vpop.f32.mrb[0].mxu0
      %640 = vmatprep.mubr.bf16.mxu0 0
      %641 = vmatmul.mubr.bf16.gmra.mrb[0].mxu0 %v501
      %v642 = vpop.f32.mrb[0].mxu0
      %v643 = vadd.f32 %v526, %v642
      %v644 = vpop.f32.mrb[0].mxu0
      %v645 = vpop.f32.mrb[0].mxu0
      %v646 = vadd.f32 %v526, %v645
      %v647 = vpop.f32.mrb[0].mxu0
      %648 = vmatprep.mubr.bf16.mxu0 0
      %649 = vmatmul.mubr.bf16.gmra.mrb[0].mxu0 %v502
      %v650 = vpop.f32.mrb[0].mxu0
      %v651 = vadd.f32 %v526, %v650
      %v652 = vpop.f32.mrb[0].mxu0
      %v653 = vpop.f32.mrb[0].mxu0
      %v654 = vadd.f32 %v526, %v653
      %v655 = vpop.f32.mrb[0].mxu0
      %656 = vmatprep.mubr.bf16.mxu0 0
      %657 = vmatmul.mubr.bf16.gmra.mrb[0].mxu0 %v503
      %v658 = vpop.f32.mrb[0].mxu0
      %v659 = vadd.f32 %v526, %v658
      %v660 = vpop.f32.mrb[0].mxu0
      %v661 = vpop.f32.mrb[0].mxu0
      %v662 = vadd.f32 %v526, %v661
      %v663 = vpop.f32.mrb[0].mxu0
      %664 = vmatprep.mubr.bf16.mxu0 0
      %665 = vmatmul.mubr.bf16.gmra.mrb[0].mxu0 %v504
      %v666 = vpop.f32.mrb[0].mxu0
      %v667 = vadd.f32 %v526, %v666
      %v668 = vpop.f32.mrb[0].mxu0
      %v669 = vpop.f32.mrb[0].mxu0
      %v670 = vadd.f32 %v526, %v669
      %v671 = vpop.f32.mrb[0].mxu0
      %672 = vdwg.mxu0
      %v673 = vpack.c.bf16 %v614, %v611
      %v674 = vpack.c.bf16 %v622, %v619
      %v675 = vpack.c.bf16 %v630, %v627
      %v676 = vpack.c.bf16 %v638, %v635
      %v677 = vpack.c.bf16 %v646, %v643
      %v678 = vpack.c.bf16 %v654, %v651
      %v679 = vpack.c.bf16 %v662, %v659
      %v680 = vpack.c.bf16 %v670, %v667
      %v689 = vunpack.c.l.b16 %v673
      %v690 = vunpack.c.h.b16 %v673
      %v691 = vunpack.c.l.b16 %v674
      %v692 = vunpack.c.h.b16 %v674
      %v693 = vunpack.c.l.b16 %v675
      %v694 = vunpack.c.h.b16 %v675
      %v695 = vunpack.c.l.b16 %v676
      %v696 = vunpack.c.h.b16 %v676
      %v697 = vunpack.c.l.b16 %v677
      %v698 = vunpack.c.h.b16 %v677
      %v699 = vunpack.c.l.b16 %v678
      %v700 = vunpack.c.h.b16 %v678
      %v701 = vunpack.c.l.b16 %v679
      %v702 = vunpack.c.h.b16 %v679
      %v703 = vunpack.c.l.b16 %v680
      %v704 = vunpack.c.h.b16 %v680
      %v705 = vpack.c.b16 %v689, %v689
      %v706 = vpack.c.b16 %v690, %v690
      %v707 = vpack.c.b16 %v691, %v691
      %v708 = vpack.c.b16 %v692, %v692
      %v709 = vpack.c.b16 %v693, %v693
      %v710 = vpack.c.b16 %v694, %v694
      %v711 = vpack.c.b16 %v695, %v695
      %v712 = vpack.c.b16 %v696, %v696
      %v713 = vpack.c.b16 %v697, %v697
      %v714 = vpack.c.b16 %v698, %v698
      %v715 = vpack.c.b16 %v699, %v699
      %v716 = vpack.c.b16 %v700, %v700
      %v717 = vpack.c.b16 %v701, %v701
      %v718 = vpack.c.b16 %v702, %v702
      %v719 = vpack.c.b16 %v703, %v703
      %v720 = vpack.c.b16 %v704, %v704
      %737 = vst [vmem:[%s226] sm:$0xf] %v705
      %738 = vst [vmem:[%s226 + $0x4] sm:$0xf] %v706
      %739 = vst [vmem:[%s226 + $0x8] sm:$0xf] %v707
      %740 = vst [vmem:[%s226 + $0xc] sm:$0xf] %v708
      %741 = vst [vmem:[%s226 + $0x10] sm:$0xf] %v709
      %742 = vst [vmem:[%s226 + $0x14] sm:$0xf] %v710
      %743 = vst [vmem:[%s226 + $0x18] sm:$0xf] %v711
      %744 = vst [vmem:[%s226 + $0x1c] sm:$0xf] %v712
      %745 = vst [vmem:[%s226 + $0x20] sm:$0xf] %v713
      %746 = vst [vmem:[%s226 + $0x24] sm:$0xf] %v714
      %747 = vst [vmem:[%s226 + $0x28] sm:$0xf] %v715
      %748 = vst [vmem:[%s226 + $0x2c] sm:$0xf] %v716
      %749 = vst [vmem:[%s226 + $0x30] sm:$0xf] %v717
      %750 = vst [vmem:[%s226 + $0x34] sm:$0xf] %v718
      %751 = vst [vmem:[%s226 + $0x38] sm:$0xf] %v719
      %752 = vst [vmem:[%s226 + $0x3c] sm:$0xf] %v720
      %s753 = smul.u32 16, %s16
      %p754 = scmp.lt.s32.totalorder %s753, 31
      %s755 = scalar_select %p754, %s753, 31
      %s756 = smul.addr %s755, 4
      %s757 = scalar_lea.vmem %s5, %s756
      // Predicated region
      $region41: #{network_forward.1} parent=39 // pred_check
        %p758 = pneg %p144
      $region42: #{network_forward.1} parent=39 // pred_check_branch
        %760 = sbr.rel (%p758) target = $region44
      $region43: #{network_forward.1} parent=39 // pred_region
        %s761 = smul.u32 16, %s16
      $region44: #{network_forward.1} parent=39 // pred_fallthru
        _
    $region40: #{network_forward.1} parent=5 // pred_fallthru
      _
    %p762 = scmp.le.s32.totalorder 2, %s11
    // Predicated region
    $region45: #{network_forward.1} parent=5 // pred_check
      %p763 = pneg %p762
    $region46: #{network_forward.1} parent=5 // pred_check_branch
      %765 = sbr.rel (%p763) target = $region48
    $region47: #{network_forward.1} parent=5 // pred_region
      %s766 = ssub.s32 %s11, 2
      // Predicated region
      $region49: #{network_forward.1} parent=47 // pred_check
        %p767 = pneg %p150
      $region50: #{network_forward.1} parent=47 // pred_check_branch
        %769 = sbr.rel (%p767) target = $region52
      $region51: #{network_forward.1} parent=47 // pred_region
        %s770 = smul.u32 16, %s17
        %p771 = scmp.lt.s32.totalorder %s770, 31
        %s772 = scalar_select %p771, %s770, 31
        %s773 = smul.addr %s772, 4
        %s774 = scalar_lea.vmem %s5, %s773
      $region52: #{network_forward.1} parent=47 // pred_fallthru
        _
    $region48: #{network_forward.1} parent=5 // pred_fallthru
      _
  $region6: #{network_forward.1} parent=0 // loop_footer
    %s15 = sadd.s32 1, %s11
  $region7: #{network_forward.1} parent=0 // loop_footer_branch
    %10 = sbr.rel target = $region3
  $region8: #{network_forward.1} parent=0 // loop_exit
    _

</llo_original>
